<compile_context>
chip_gen: v7x
topology: tpu7x:2x2x1
jax: 0.10.0
libtpu: 0.0.40
codegen_flags: <defaults>
</compile_context>

<pallas_src>
import functools

import jax
import jax.numpy as jnp
from jax.experimental import pallas as pl
from jax.experimental.pallas import tpu as pltpu


# ----------------------------------------------------------------------------------
# Pallas matmul kernel (bias + optional ReLU fused, bf16 operands, f32 accumulation)
# ----------------------------------------------------------------------------------
def _matmul_bias_kernel(x_ref, w_ref, b_ref, o_ref, acc_ref, *, relu):
    @pl.when(pl.program_id(2) == 0)
    def _():
        acc_ref[...] = jnp.zeros_like(acc_ref)

    acc_ref[...] += jnp.dot(x_ref[...], w_ref[...],
                            preferred_element_type=jnp.float32)

    @pl.when(pl.program_id(2) == pl.num_programs(2) - 1)
    def _():
        r = acc_ref[...] + b_ref[...]
        if relu:
            r = jnp.maximum(r, 0.0)
        o_ref[...] = r.astype(o_ref.dtype)


def _round_up(x, m):
    return ((x + m - 1) // m) * m


def _pad_to(x, target, axis):
    pad = target - x.shape[axis]
    if pad == 0:
        return x
    cfg = [(0, 0)] * x.ndim
    cfg[axis] = (0, pad)
    return jnp.pad(x, cfg)


def _select_tiles(M, K, N):
    # M: only sublane alignment (16 for bf16 operands); single M block if it fits.
    Mp = _round_up(M, 16)
    if Mp <= 512:
        tm = Mp
    else:
        tm = 256
        Mp = _round_up(Mp, tm)
    # K: lane-align to 128; largest tile (<=1024) that divides Kp exactly keeps the
    # serial reduction ("arbitrary") axis short with zero K-padding waste.
    Kp = _round_up(K, 128)
    if Kp <= 1024:
        tk = Kp
    else:
        tk = 512
        for cand in (1024, 896, 768, 640, 512, 384, 256, 128):
            if Kp % cand == 0:
                tk = cand
                break
        Kp = _round_up(Kp, tk)
    # N: lane-align to 128; 256-wide tiles where they divide evenly.
    Np = _round_up(N, 128)
    tn = 256 if Np % 256 == 0 else 128
    return Mp, Kp, Np, tm, tk, tn


def matmul_bias(x, w, b, relu=False, out_dtype=jnp.float32):
    """y = x @ w + b (optional fused ReLU) on the MXU via a tiled Pallas kernel."""
    M, K = x.shape
    K2, N = w.shape
    assert K == K2
    Mp, Kp, Np, tm, tk, tn = _select_tiles(M, K, N)
    xp = _pad_to(_pad_to(x.astype(jnp.bfloat16), Mp, 0), Kp, 1)
    wp = _pad_to(_pad_to(w.astype(jnp.bfloat16), Kp, 0), Np, 1)
    bp = _pad_to(b.astype(jnp.float32).reshape(1, N), Np, 1)
    grid = (Mp // tm, Np // tn, Kp // tk)
    kern = functools.partial(_matmul_bias_kernel, relu=relu)
    out = pl.pallas_call(
        kern,
        out_shape=jax.ShapeDtypeStruct((Mp, Np), out_dtype),
        grid_spec=pltpu.PrefetchScalarGridSpec(
            num_scalar_prefetch=0,
            grid=grid,
            in_specs=[
                pl.BlockSpec((tm, tk), lambda i, j, k: (i, k)),
                pl.BlockSpec((tk, tn), lambda i, j, k: (k, j)),
                pl.BlockSpec((1, tn), lambda i, j, k: (0, j)),
            ],
            out_specs=pl.BlockSpec((tm, tn), lambda i, j, k: (i, j)),
            scratch_shapes=[pltpu.VMEM((tm, tn), jnp.float32)],
        ),
        compiler_params=pltpu.CompilerParams(
            dimension_semantics=("parallel", "parallel", "arbitrary")),
    )(xp, wp, bp)
    return out[:M, :N]


# ----------------------------------------------------------------------------------
# Conv / FPN helpers (im2col glue around the Pallas matmul)
# ----------------------------------------------------------------------------------
def im2col(x, kh, kw, stride, pad):
    # x: (N, H, W, C) -> (N, Ho, Wo, kh*kw*C)
    if pad:
        x = jnp.pad(x, ((0, 0), (pad, pad), (pad, pad), (0, 0)))
    N, H, W, C = x.shape
    Ho = (H - kh) // stride + 1
    Wo = (W - kw) // stride + 1
    cols = []
    for i in range(kh):
        for j in range(kw):
            cols.append(x[:, i:i + (Ho - 1) * stride + 1:stride,
                          j:j + (Wo - 1) * stride + 1:stride, :])
    return jnp.concatenate(cols, axis=-1), Ho, Wo


def conv2d(x, w, b, stride=1, pad=0, relu=False, out_dtype=jnp.bfloat16):
    # w layout: (kh, kw, Cin, Cout)
    kh, kw, cin, cout = w.shape
    cols, Ho, Wo = im2col(x, kh, kw, stride, pad)
    N = x.shape[0]
    y = matmul_bias(cols.reshape(N * Ho * Wo, kh * kw * cin),
                    w.reshape(kh * kw * cin, cout), b, relu=relu,
                    out_dtype=out_dtype)
    return y.reshape(N, Ho, Wo, cout)


def upsample_add(x, y):
    # TODO(synk): original _upsample_add uses bilinear upsampling; nearest 2x used here.
    # Plain jnp on these tiny maps so XLA fuses it (no standalone add kernel launch).
    x_up = jnp.repeat(jnp.repeat(x, 2, axis=1), 2, axis=2)
    return x_up + y


# ----------------------------------------------------------------------------------
# Config / params
# ----------------------------------------------------------------------------------
class Configer:
    def __init__(self, d):
        self.d = d

    def get(self, *keys):
        v = self.d
        for k in keys:
            v = v[k]
        return v


def conv_params(key, kh, kw, cin, cout, std=0.01):
    w = std * jax.random.normal(key, (kh, kw, cin, cout), jnp.float32)
    b = jnp.zeros((cout,), jnp.float32)
    return w, b


def linear_params(key, fin, fout, std=0.01):
    w = std * jax.random.normal(key, (fin, fout), jnp.float32)
    b = jnp.zeros((fout,), jnp.float32)
    return w, b


def init_params(key, cfg):
    keys = iter(jax.random.split(key, 32))
    num_classes = cfg.get('data', 'num_classes')
    pooled = cfg.get('roi', 'pooled_height')
    A = cfg.get('rpn', 'num_anchor_list')[0]
    p = {}
    # TODO(synk): BackboneSelector (ResNet) is external to this module; a synthetic
    # strided-conv backbone with the channel counts FpnRCNN expects (64/256/512/1024/2048).
    p['bb0'] = conv_params(next(keys), 3, 3, 3, 64)
    p['bb1'] = conv_params(next(keys), 1, 1, 64, 256)
    p['bb2'] = conv_params(next(keys), 1, 1, 256, 512)
    p['bb3'] = conv_params(next(keys), 1, 1, 512, 1024)
    p['bb4'] = conv_params(next(keys), 1, 1, 1024, 2048)
    # FPN neck (exact channel counts from FpnRCNN.__init__)
    p['toplayer'] = conv_params(next(keys), 1, 1, 2048, 256)
    p['smooth1'] = conv_params(next(keys), 3, 3, 256, 256)
    p['smooth2'] = conv_params(next(keys), 3, 3, 256, 256)
    p['smooth3'] = conv_params(next(keys), 3, 3, 256, 256)
    p['lat1'] = conv_params(next(keys), 1, 1, 1024, 256)
    p['lat2'] = conv_params(next(keys), 1, 1, 512, 256)
    p['lat3'] = conv_params(next(keys), 1, 1, 256, 256)
    # RPN (NaiveRPN + RPNDetectionLayer heads, std 0.01, zero bias)
    p['rpn_conv'] = conv_params(next(keys), 3, 3, 256, 512)
    p['rpn_loc'] = conv_params(next(keys), 1, 1, 512, A * 4)
    p['rpn_score'] = conv_params(next(keys), 1, 1, 512, A * 2)
    # RCNN_top + RoIHead
    p['top1'] = conv_params(next(keys), pooled, pooled, 256, 1024)
    p['top2'] = conv_params(next(keys), 1, 1, 1024, 1024)
    n_loc = 4 if cfg.get('roi', 'class_agnostic') else 4 * num_classes
    p['cls_loc'] = linear_params(next(keys), 1024, n_loc, std=0.001)
    p['score'] = linear_params(next(keys), 1024, num_classes, std=0.01)
    return p


# ----------------------------------------------------------------------------------
# RoI head
# ----------------------------------------------------------------------------------
def roi_pool_nearest(feat, rois, scale, P):
    # TODO(synk): FRRoiProcessLayer (RoIAlign) is external; nearest-neighbor grid sampling.
    N, Hf, Wf, C = feat.shape
    bidx = rois[:, 0].astype(jnp.int32)
    x1, y1 = rois[:, 1] * scale, rois[:, 2] * scale
    x2, y2 = rois[:, 3] * scale, rois[:, 4] * scale
    grid = (jnp.arange(P, dtype=jnp.float32) + 0.5) / P
    ys = y1[:, None] + grid[None, :] * (y2 - y1)[:, None]
    xs = x1[:, None] + grid[None, :] * (x2 - x1)[:, None]
    yi = jnp.clip(jnp.floor(ys), 0, Hf - 1).astype(jnp.int32)
    xi = jnp.clip(jnp.floor(xs), 0, Wf - 1).astype(jnp.int32)
    return feat[bidx[:, None, None], yi[:, :, None], xi[:, None, :], :]


def roi_head(p, cfg, feat_maps, indices_and_rois, input_size):
    pooled = cfg.get('roi', 'pooled_height')
    rois = indices_and_rois
    h = rois[:, 4] - rois[:, 2] + 1.0
    w = rois[:, 3] - rois[:, 1] + 1.0
    # torch.log in the reference is the natural log; kept identical here.
    roi_level = jnp.round(jnp.log(jnp.sqrt(h * w) / 224.0) + 4.0)
    roi_level = jnp.clip(roi_level, 2.0, 5.0)
    # Dense per-level pooling + masked select (keeps shapes static; preserves
    # the original RoI order, so the torch.sort round-trip is the identity here).
    roi_pool_feat = None
    for i, l in enumerate(range(2, 6)):
        feat = feat_maps[i]
        scale = feat.shape[1] / input_size[1]
        pf = roi_pool_nearest(feat, rois, scale, pooled)
        mask = (roi_level == l).astype(pf.dtype)[:, None, None, None]
        pf = pf * mask
        roi_pool_feat = pf if roi_pool_feat is None else roi_pool_feat + pf
    R = roi_pool_feat.shape[0]
    # RCNN_top: Conv(256->1024, k=pooled, s=pooled) + ReLU  ==  matmul over the window
    w1, b1 = p['top1']
    block5 = matmul_bias(roi_pool_feat.reshape(R, pooled * pooled * 256),
                         w1.reshape(pooled * pooled * 256, 1024), b1, relu=True,
                         out_dtype=jnp.bfloat16)
    w2, b2 = p['top2']
    block5 = matmul_bias(block5, w2.reshape(1024, 1024), b2, relu=True,
                         out_dtype=jnp.bfloat16)
    pooled_feat = block5  # block5.mean(3).mean(2) over the 1x1 spatial output
    # Fused cls_loc + score head: one lane-dense matmul, split with cheap slices.
    wl, bl = p['cls_loc']
    ws, bs = p['score']
    n_loc = wl.shape[1]
    head = matmul_bias(pooled_feat,
                       jnp.concatenate([wl, ws], axis=1),
                       jnp.concatenate([bl, bs]),
                       out_dtype=jnp.float32)
    roi_cls_locs = head[:, :n_loc]
    roi_scores = head[:, n_loc:]
    return roi_cls_locs, roi_scores


def make_synthetic_rois():
    # TODO(synk): FRRoiGenerator (proposal decoding + NMS) has no clean Pallas
    # equivalent; deterministic synthetic RoIs spanning FPN levels 2..5 are used.
    sizes = jnp.array([24., 48., 120., 224., 320., 500., 60., 96.], jnp.float32)
    cx = jnp.array([32., 20., 40., 32., 30., 32., 16., 48.], jnp.float32)
    cy = jnp.array([32., 40., 24., 32., 34., 32., 48., 16.], jnp.float32)
    x1, x2 = cx - sizes / 2, cx + sizes / 2
    y1, y2 = cy - sizes / 2, cy + sizes / 2
    bidx = jnp.zeros_like(sizes)
    return jnp.stack([bidx, x1, y1, x2, y2], axis=1)  # (R, 5)


# ----------------------------------------------------------------------------------
# Full forward (test phase of FpnRCNN.forward)
# ----------------------------------------------------------------------------------
def fpn_rcnn_forward(p, cfg, x_nchw):
    x = jnp.transpose(x_nchw, (0, 2, 3, 1))            # NCHW -> NHWC
    input_size = [x_nchw.shape[3], x_nchw.shape[2]]    # [W, H]

    # Backbone (synthetic, correct channel counts / strides), bf16 feature maps
    c1 = conv2d(x, *p['bb0'], stride=4, pad=1, relu=True)
    c2 = conv2d(c1, *p['bb1'], stride=1, pad=0, relu=True)
    c3 = conv2d(c2, *p['bb2'], stride=2, pad=0, relu=True)
    c4 = conv2d(c3, *p['bb3'], stride=2, pad=0, relu=True)
    c5 = conv2d(c4, *p['bb4'], stride=2, pad=0, relu=True)

    # FPN neck
    p5 = conv2d(c5, *p['toplayer'])
    p4 = conv2d(upsample_add(p5, conv2d(c4, *p['lat1'])), *p['smooth1'], pad=1)
    p3 = conv2d(upsample_add(p4, conv2d(c3, *p['lat2'])), *p['smooth2'], pad=1)
    p2 = conv2d(upsample_add(p3, conv2d(c2, *p['lat3'])), *p['smooth3'], pad=1)
    p6 = p5[:, ::2, ::2, :]                             # nn.MaxPool2d(1, stride=2)

    rpn_feature_maps = [p2, p3, p4, p5, p6]
    mrcnn_feature_maps = [p2, p3, p4, p5]

    # NaiveRPN: weights are shared across levels, so batch all levels along the
    # row axis and run ONE 3x3 rpn_conv matmul + ONE fused loc/score head matmul
    # (instead of 15 separate pallas_calls).
    wc, bc = p['rpn_conv']
    cols_list, level_shapes = [], []
    for fm in rpn_feature_maps:
        cols, Ho, Wo = im2col(fm, 3, 3, 1, 1)
        Nb = fm.shape[0]
        cols_list.append(cols.reshape(Nb * Ho * Wo, -1))
        level_shapes.append((Nb, Ho, Wo))
    all_cols = jnp.concatenate(cols_list, axis=0)
    rc = matmul_bias(all_cols, wc.reshape(-1, wc.shape[-1]), bc, relu=True,
                     out_dtype=jnp.bfloat16)
    wl, bl = p['rpn_loc']
    ws, bs = p['rpn_score']
    nl, ns = wl.shape[-1], ws.shape[-1]
    head = matmul_bias(rc,
                       jnp.concatenate([wl.reshape(-1, nl), ws.reshape(-1, ns)],
                                       axis=1),
                       jnp.concatenate([bl, bs]),
                       out_dtype=jnp.float32)
    rpn_locs, rpn_scores = [], []
    off = 0
    for (Nb, Ho, Wo) in level_shapes:
        n = Nb * Ho * Wo
        rpn_locs.append(head[off:off + n, :nl].reshape(Nb, Ho * Wo * (nl // 4), 4))
        rpn_scores.append(head[off:off + n, nl:].reshape(Nb, Ho * Wo * (ns // 2), 2))
        off += n
    rpn_locs = jnp.concatenate(rpn_locs, axis=1)
    rpn_scores = jnp.concatenate(rpn_scores, axis=1)

    indices_and_rois = make_synthetic_rois()
    test_rois_num = jnp.array([indices_and_rois.shape[0]], jnp.int32)
    roi_cls_locs, roi_scores = roi_head(p, cfg, mrcnn_feature_maps,
                                        indices_and_rois, input_size)
    return indices_and_rois, roi_cls_locs, roi_scores, test_rois_num


if __name__ == "__main__":
    cfg = Configer({
        'data': {'num_classes': 3},
        'roi': {'pooled_height': 2, 'pooled_width': 2, 'class_agnostic': False},
        'rpn': {'num_anchor_list': [3, 3, 3, 3, 3],
                'n_test_pre_nms': 32, 'n_test_post_nms': 8,
                'n_train_pre_nms': 32, 'n_train_post_nms': 8},
        'phase': 'test',
    })
    key = jax.random.PRNGKey(0)
    pkey, xkey = jax.random.split(key)
    params = init_params(pkey, cfg)
    x = jax.random.normal(xkey, (1, 3, 64, 64), jnp.float32)  # NCHW, like PyTorch

    out = fpn_rcnn_forward(params, cfg, x)
    out = jax.block_until_ready(out)
    indices_and_rois, roi_cls_locs, roi_scores, test_rois_num = out
    assert indices_and_rois.shape == (8, 5)
    assert roi_cls_locs.shape == (8, 4 * cfg.get('data', 'num_classes'))
    assert roi_scores.shape == (8, cfg.get('data', 'num_classes'))
    print("KERNEL_OK")
</pallas_src>

<mosaic_0001>
module attributes {stable_mosaic.version = 11 : i64} {
  func.func @_matmul_bias_kernel(%arg0: i32, %arg1: i32, %arg2: i32, %arg3: memref<256x128xbf16, #tpu.memory_space<vmem>>, %arg4: memref<128x128xbf16, #tpu.memory_space<vmem>>, %arg5: memref<1x128xf32, #tpu.memory_space<vmem>>, %arg6: memref<256x128xbf16, #tpu.memory_space<vmem>>, %arg7: memref<256x128xf32, #tpu.memory_space<vmem>>) attributes {dimension_semantics = [#tpu.dimension_semantics<parallel>, #tpu.dimension_semantics<parallel>, #tpu.dimension_semantics<arbitrary>], iteration_bounds = array<i64: 1, 1, 1>, scalar_prefetch = 0 : i64, scratch_operands = 1 : i64, tpu.core_type = #tpu.core_type<tc>, window_params = [{transform_indices = @transform_0, window_bounds = array<i64: 256, 128>}, {transform_indices = @transform_1, window_bounds = array<i64: 128, 128>}, {transform_indices = @transform_2, window_bounds = array<i64: 1, 128>}, {transform_indices = @transform_3, window_bounds = array<i64: 256, 128>}]} {
    %c0_i32 = arith.constant 0 : i32
    %0 = arith.cmpi eq, %arg2, %c0_i32 : i32
    %1 = arith.extui %0 : i1 to i32
    %c0_i32_0 = arith.constant 0 : i32
    %2 = arith.cmpi ne, %1, %c0_i32_0 : i32
    scf.if %2 {
      %cst_10 = arith.constant 0.000000e+00 : f32
      %12 = vector.broadcast %cst_10 : f32 to vector<256x128xf32>
      %c0_11 = arith.constant 0 : index
      %c0_12 = arith.constant 0 : index
      %13 = vector.load %arg7[%c0_11, %c0_12] : memref<256x128xf32, #tpu.memory_space<vmem>>, vector<256x128xf32>
      tpu.vector_store %arg7[%c0_11, %c0_12], %12 {strides = array<i32>} : memref<256x128xf32, #tpu.memory_space<vmem>>, vector<256x128xf32>,
    } else {
    }
    %c0 = arith.constant 0 : index
    %c0_1 = arith.constant 0 : index
    %3 = vector.load %arg7[%c0, %c0_1] : memref<256x128xf32, #tpu.memory_space<vmem>>, vector<256x128xf32>
    %c0_2 = arith.constant 0 : index
    %c0_3 = arith.constant 0 : index
    %4 = vector.load %arg3[%c0_2, %c0_3] : memref<256x128xbf16, #tpu.memory_space<vmem>>, vector<256x128xbf16>
    %c0_4 = arith.constant 0 : index
    %c0_5 = arith.constant 0 : index
    %5 = vector.load %arg4[%c0_4, %c0_5] : memref<128x128xbf16, #tpu.memory_space<vmem>>, vector<128x128xbf16>
    %cst = arith.constant dense<0.000000e+00> : vector<256x128xf32>
    %6 = tpu.matmul %4, %5, %cst {dimension_numbers = #tpu.dot_dimension_numbers<[1], [0], [0], [1], [0, 0, 1, 1], [], []>} : vector<256x128xbf16>, vector<128x128xbf16>, vector<256x128xf32> -> vector<256x128xf32>
    %7 = arith.addf %3, %6 : vector<256x128xf32>
    %c0_6 = arith.constant 0 : index
    %c0_7 = arith.constant 0 : index
    %8 = vector.load %arg7[%c0_6, %c0_7] : memref<256x128xf32, #tpu.memory_space<vmem>>, vector<256x128xf32>
    tpu.vector_store %arg7[%c0_6, %c0_7], %7 {strides = array<i32>} : memref<256x128xf32, #tpu.memory_space<vmem>>, vector<256x128xf32>,
    %c0_i32_8 = arith.constant 0 : i32
    %9 = arith.cmpi eq, %arg2, %c0_i32_8 : i32
    %10 = arith.extui %9 : i1 to i32
    %c0_i32_9 = arith.constant 0 : i32
    %11 = arith.cmpi ne, %10, %c0_i32_9 : i32
    scf.if %11 {
      %c0_10 = arith.constant 0 : index
      %c0_11 = arith.constant 0 : index
      %12 = vector.load %arg7[%c0_10, %c0_11] : memref<256x128xf32, #tpu.memory_space<vmem>>, vector<256x128xf32>
      %c0_12 = arith.constant 0 : index
      %c0_13 = arith.constant 0 : index
      %13 = vector.load %arg5[%c0_12, %c0_13] : memref<1x128xf32, #tpu.memory_space<vmem>>, vector<1x128xf32>
      %14 = vector.broadcast %13 : vector<1x128xf32> to vector<256x128xf32>
      %15 = arith.addf %12, %14 : vector<256x128xf32>
      %cst_14 = arith.constant 0.000000e+00 : f32
      %16 = vector.broadcast %cst_14 : f32 to vector<256x128xf32>
      %17 = arith.maximumf %15, %16 : vector<256x128xf32>
      %18 = arith.truncf %17 : vector<256x128xf32> to vector<256x128xbf16>
      %c0_15 = arith.constant 0 : index
      %c0_16 = arith.constant 0 : index
      %19 = vector.load %arg6[%c0_15, %c0_16] : memref<256x128xbf16, #tpu.memory_space<vmem>>, vector<256x128xbf16>
      tpu.vector_store %arg6[%c0_15, %c0_16], %18 {strides = array<i32>} : memref<256x128xbf16, #tpu.memory_space<vmem>>, vector<256x128xbf16>,
    } else {
    }
    return
  }
  func.func @transform_0(%arg0: i32, %arg1: i32, %arg2: i32) -> (i32, i32) {
    %c0_i32 = arith.constant 0 : i32
    return %arg0, %arg2 : i32, i32
  }
  func.func @transform_1(%arg0: i32, %arg1: i32, %arg2: i32) -> (i32, i32) {
    %c0_i32 = arith.constant 0 : i32
    return %arg2, %arg1 : i32, i32
  }
  func.func @transform_2(%arg0: i32, %arg1: i32, %arg2: i32) -> (i32, i32) {
    %c0_i32 = arith.constant 0 : i32
    %c0_i32_0 = arith.constant 0 : i32
    return %c0_i32, %arg1 : i32, i32
  }
  func.func @transform_3(%arg0: i32, %arg1: i32, %arg2: i32) -> (i32, i32) {
    %c0_i32 = arith.constant 0 : i32
    return %arg0, %arg1 : i32, i32
  }
}

</mosaic_0001>

<llo_original>
// kernel: tpu_custom_call.1
$region0: #{tpu_custom_call.1}
  #allocation0 [shape = 'u32[]', space=smem, size = 0x4, offset = 0x4, fixed_abs, tag = 'smem constant byte address 0x4 - core index']
  #allocation1 [shape = 'u32[144,128]{1,0:T(1,128)}', space=vmem, size = 0x12000, scoped, tag = 'internal scratch']
  #allocation2 [shape = 'f32[256,128]{1,0:T(8,128)}', space=vmem, size = 0x20000, scoped, tag = 'scratch operand']
  %s0 = inlined_call_operand.hbm [shape: bf16[256,128], index: 0, kind: input, shape index: {}]
  %s1 = inlined_call_operand.hbm [shape: bf16[128,128], index: 1, kind: input, shape index: {}]
  %s2 = inlined_call_operand.vmem [shape: f32[1,128], index: 2, kind: input, shape index: {}]
  %s3 = inlined_call_operand.hbm [shape: bf16[256,128], index: 3, kind: output, shape index: {}]
  %s4 = sld [smem:[#allocation0]]
  $region38: #{tpu_custom_call.1} parent=0
    _
  %s6 = ssub.s32 1, %s4
  %s7 = scalar_select 0, %s6, %s4
  $region1: #{tpu_custom_call.1} parent=0
    #allocation3 [shape = 'u8[65536]{0}', space=vmem, size = 0x10000, scoped, tag = 'input window, operand 0, single buffered']
    #allocation4 [shape = 's32[1]{0}', space=sflag, size = 0x4, scoped, tag = 'scoped memory for tpu_custom_call.1']
    #allocation5 [shape = 's32[1]{0}', space=sflag, size = 0x4, scoped, tag = 'scoped memory for tpu_custom_call.1']
    #allocation6 [shape = 'u8[32768]{0}', space=vmem, size = 0x8000, scoped, tag = 'input window, operand 1, single buffered']
    #allocation7 [shape = 's32[1]{0}', space=sflag, size = 0x4, scoped, tag = 'scoped memory for tpu_custom_call.1']
    #allocation8 [shape = 'u8[65536]{0}', space=vmem, size = 0x10000, scoped, tag = 'output window, operand 0, single buffered']
    %8 = vsyncpa [#allocation4], 0
    %9 = vsyncpa [#allocation7], 0
    %10 = vsyncpa [#allocation5], 0
    // Predicated region
    $region2: #{tpu_custom_call.1} parent=1 // pred_check
      _
    $region3: #{tpu_custom_call.1} parent=1 // pred_check_branch
      %12 = sbr.rel (0) target = $region5
    $region4: #{tpu_custom_call.1} parent=1 // pred_region
      %s14 = ssub.s32 2048, 2048
      %15 = vsyncadd [#allocation4], %s14
      %s16 = sshll.u32 [#allocation3], 4
      %s17 = int_to_ptr.vmem [resolvable:$true] %s16
      %22 = dma.hbm_to_vmem [thread:$0]  %s0, 2048, %s17, [#allocation4], 64, 64, 4
    $region5: #{tpu_custom_call.1} parent=1 // pred_fallthru
      _
    // Predicated region
    $region6: #{tpu_custom_call.1} parent=1 // pred_check
      _
    $region7: #{tpu_custom_call.1} parent=1 // pred_check_branch
      %24 = sbr.rel (0) target = $region9
    $region8: #{tpu_custom_call.1} parent=1 // pred_region
      %s26 = ssub.s32 1024, 1024
      %27 = vsyncadd [#allocation7], %s26
      %s28 = sshll.u32 [#allocation6], 4
      %s29 = int_to_ptr.vmem [resolvable:$true] %s28
      %34 = dma.hbm_to_vmem [thread:$0]  %s1, 1024, %s29, [#allocation7], 64, 64, 4
    $region9: #{tpu_custom_call.1} parent=1 // pred_fallthru
      _
    // Predicated region
    $region10: #{tpu_custom_call.1} parent=1 // pred_check
      _
    $region11: #{tpu_custom_call.1} parent=1 // pred_check_branch
      %36 = sbr.rel (0) target = $region13
    $region12: #{tpu_custom_call.1} parent=1 // pred_region
      _
    $region13: #{tpu_custom_call.1} parent=1 // pred_fallthru
      _
    // Predicated region
    $region14: #{tpu_custom_call.1} parent=1 // pred_check
      _
    $region15: #{tpu_custom_call.1} parent=1 // pred_check_branch
      %38 = sbr.rel (0) target = $region17
    $region16: #{tpu_custom_call.1} parent=1 // pred_region
      %39 = dma.done [#allocation4], 2048
    $region17: #{tpu_custom_call.1} parent=1 // pred_fallthru
      _
    // Predicated region
    $region18: #{tpu_custom_call.1} parent=1 // pred_check
      _
    $region19: #{tpu_custom_call.1} parent=1 // pred_check_branch
      %41 = sbr.rel (0) target = $region21
    $region20: #{tpu_custom_call.1} parent=1 // pred_region
      %42 = dma.done [#allocation7], 1024
    $region21: #{tpu_custom_call.1} parent=1 // pred_fallthru
      _
    %p44 = scmp.eq.s32.totalorder 0, 0
    // Predicated region
    $region22: #{tpu_custom_call.1} parent=1 // pred_check
      %p45 = pneg %p44
    $region23: #{tpu_custom_call.1} parent=1 // pred_check_branch
      %47 = sbr.rel (%p45) target = $region25
    $region24: #{tpu_custom_call.1} parent=1 // pred_region
      %48 = vst [vmem:[#allocation2] sm:$0xff] 0.0
      %49 = vst [vmem:[#allocation2 + $0x8] sm:$0xff] 0.0
      %50 = vst [vmem:[#allocation2 + $0x10] sm:$0xff] 0.0
      %51 = vst [vmem:[#allocation2 + $0x18] sm:$0xff] 0.0
      %52 = vst [vmem:[#allocation2 + $0x20] sm:$0xff] 0.0
      %53 = vst [vmem:[#allocation2 + $0x28] sm:$0xff] 0.0
      %54 = vst [vmem:[#allocation2 + $0x30] sm:$0xff] 0.0
      %55 = vst [vmem:[#allocation2 + $0x38] sm:$0xff] 0.0
      %56 = vst [vmem:[#allocation2 + $0x40] sm:$0xff] 0.0
      %57 = vst [vmem:[#allocation2 + $0x48] sm:$0xff] 0.0
      %58 = vst [vmem:[#allocation2 + $0x50] sm:$0xff] 0.0
      %59 = vst [vmem:[#allocation2 + $0x58] sm:$0xff] 0.0
      %60 = vst [vmem:[#allocation2 + $0x60] sm:$0xff] 0.0
      %61 = vst [vmem:[#allocation2 + $0x68] sm:$0xff] 0.0
      %62 = vst [vmem:[#allocation2 + $0x70] sm:$0xff] 0.0
      %63 = vst [vmem:[#allocation2 + $0x78] sm:$0xff] 0.0
      %64 = vst [vmem:[#allocation2 + $0x80] sm:$0xff] 0.0
      %65 = vst [vmem:[#allocation2 + $0x88] sm:$0xff] 0.0
      %66 = vst [vmem:[#allocation2 + $0x90] sm:$0xff] 0.0
      %67 = vst [vmem:[#allocation2 + $0x98] sm:$0xff] 0.0
      %68 = vst [vmem:[#allocation2 + $0xa0] sm:$0xff] 0.0
      %69 = vst [vmem:[#allocation2 + $0xa8] sm:$0xff] 0.0
      %70 = vst [vmem:[#allocation2 + $0xb0] sm:$0xff] 0.0
      %71 = vst [vmem:[#allocation2 + $0xb8] sm:$0xff] 0.0
      %72 = vst [vmem:[#allocation2 + $0xc0] sm:$0xff] 0.0
      %73 = vst [vmem:[#allocation2 + $0xc8] sm:$0xff] 0.0
      %74 = vst [vmem:[#allocation2 + $0xd0] sm:$0xff] 0.0
      %75 = vst [vmem:[#allocation2 + $0xd8] sm:$0xff] 0.0
      %76 = vst [vmem:[#allocation2 + $0xe0] sm:$0xff] 0.0
      %77 = vst [vmem:[#allocation2 + $0xe8] sm:$0xff] 0.0
      %78 = vst [vmem:[#allocation2 + $0xf0] sm:$0xff] 0.0
      %79 = vst [vmem:[#allocation2 + $0xf8] sm:$0xff] 0.0
    $region25: #{tpu_custom_call.1} parent=1 // pred_fallthru
      _
    %v80 = vld [vmem:[#allocation2] sm:$0xff]
    %v81 = vld [vmem:[#allocation2 + $0x8] sm:$0xff]
    %v82 = vld [vmem:[#allocation2 + $0x10] sm:$0xff]
    %v83 = vld [vmem:[#allocation2 + $0x18] sm:$0xff]
    %v84 = vld [vmem:[#allocation2 + $0x20] sm:$0xff]
    %v85 = vld [vmem:[#allocation2 + $0x28] sm:$0xff]
    %v86 = vld [vmem:[#allocation2 + $0x30] sm:$0xff]
    %v87 = vld [vmem:[#allocation2 + $0x38] sm:$0xff]
    %v88 = vld [vmem:[#allocation2 + $0x40] sm:$0xff]
    %v89 = vld [vmem:[#allocation2 + $0x48] sm:$0xff]
    %v90 = vld [vmem:[#allocation2 + $0x50] sm:$0xff]
    %v91 = vld [vmem:[#allocation2 + $0x58] sm:$0xff]
    %v92 = vld [vmem:[#allocation2 + $0x60] sm:$0xff]
    %v93 = vld [vmem:[#allocation2 + $0x68] sm:$0xff]
    %v94 = vld [vmem:[#allocation2 + $0x70] sm:$0xff]
    %v95 = vld [vmem:[#allocation2 + $0x78] sm:$0xff]
    %v96 = vld [vmem:[#allocation2 + $0x80] sm:$0xff]
    %v97 = vld [vmem:[#allocation2 + $0x88] sm:$0xff]
    %v98 = vld [vmem:[#allocation2 + $0x90] sm:$0xff]
    %v99 = vld [vmem:[#allocation2 + $0x98] sm:$0xff]
    %v100 = vld [vmem:[#allocation2 + $0xa0] sm:$0xff]
    %v101 = vld [vmem:[#allocation2 + $0xa8] sm:$0xff]
    %v102 = vld [vmem:[#allocation2 + $0xb0] sm:$0xff]
    %v103 = vld [vmem:[#allocation2 + $0xb8] sm:$0xff]
    %v104 = vld [vmem:[#allocation2 + $0xc0] sm:$0xff]
    %v105 = vld [vmem:[#allocation2 + $0xc8] sm:$0xff]
    %v106 = vld [vmem:[#allocation2 + $0xd0] sm:$0xff]
    %v107 = vld [vmem:[#allocation2 + $0xd8] sm:$0xff]
    %v108 = vld [vmem:[#allocation2 + $0xe0] sm:$0xff]
    %v109 = vld [vmem:[#allocation2 + $0xe8] sm:$0xff]
    %v110 = vld [vmem:[#allocation2 + $0xf0] sm:$0xff]
    %v111 = vld [vmem:[#allocation2 + $0xf8] sm:$0xff]
    %v112 = vld [vmem:[#allocation3] sm:$0xf]
    %v113 = vld [vmem:[#allocation3 + $0x4] sm:$0xf]
    %v114 = vld [vmem:[#allocation3 + $0x8] sm:$0xf]
    %v115 = vld [vmem:[#allocation3 + $0xc] sm:$0xf]
    %v116 = vld [vmem:[#allocation3 + $0x10] sm:$0xf]
    %v117 = vld [vmem:[#allocation3 + $0x14] sm:$0xf]
    %v118 = vld [vmem:[#allocation3 + $0x18] sm:$0xf]
    %v119 = vld [vmem:[#allocation3 + $0x1c] sm:$0xf]
    %v120 = vld [vmem:[#allocation3 + $0x20] sm:$0xf]
    %v121 = vld [vmem:[#allocation3 + $0x24] sm:$0xf]
    %v122 = vld [vmem:[#allocation3 + $0x28] sm:$0xf]
    %v123 = vld [vmem:[#allocation3 + $0x2c] sm:$0xf]
    %v124 = vld [vmem:[#allocation3 + $0x30] sm:$0xf]
    %v125 = vld [vmem:[#allocation3 + $0x34] sm:$0xf]
    %v126 = vld [vmem:[#allocation3 + $0x38] sm:$0xf]
    %v127 = vld [vmem:[#allocation3 + $0x3c] sm:$0xf]
    %v128 = vld [vmem:[#allocation3 + $0x40] sm:$0xf]
    %v129 = vld [vmem:[#allocation3 + $0x44] sm:$0xf]
    %v130 = vld [vmem:[#allocation3 + $0x48] sm:$0xf]
    %v131 = vld [vmem:[#allocation3 + $0x4c] sm:$0xf]
    %v132 = vld [vmem:[#allocation3 + $0x50] sm:$0xf]
    %v133 = vld [vmem:[#allocation3 + $0x54] sm:$0xf]
    %v134 = vld [vmem:[#allocation3 + $0x58] sm:$0xf]
    %v135 = vld [vmem:[#allocation3 + $0x5c] sm:$0xf]
    %v136 = vld [vmem:[#allocation3 + $0x60] sm:$0xf]
    %v137 = vld [vmem:[#allocation3 + $0x64] sm:$0xf]
    %v138 = vld [vmem:[#allocation3 + $0x68] sm:$0xf]
    %v139 = vld [vmem:[#allocation3 + $0x6c] sm:$0xf]
    %v140 = vld [vmem:[#allocation3 + $0x70] sm:$0xf]
    %v141 = vld [vmem:[#allocation3 + $0x74] sm:$0xf]
    %v142 = vld [vmem:[#allocation3 + $0x78] sm:$0xf]
    %v143 = vld [vmem:[#allocation3 + $0x7c] sm:$0xf]
    %v144 = vld [vmem:[#allocation6] sm:$0xf]
    %v145 = vld [vmem:[#allocation6 + $0x4] sm:$0xf]
    %v146 = vld [vmem:[#allocation6 + $0x8] sm:$0xf]
    %v147 = vld [vmem:[#allocation6 + $0xc] sm:$0xf]
    %v148 = vld [vmem:[#allocation6 + $0x10] sm:$0xf]
    %v149 = vld [vmem:[#allocation6 + $0x14] sm:$0xf]
    %v150 = vld [vmem:[#allocation6 + $0x18] sm:$0xf]
    %v151 = vld [vmem:[#allocation6 + $0x1c] sm:$0xf]
    %v152 = vld [vmem:[#allocation6 + $0x20] sm:$0xf]
    %v153 = vld [vmem:[#allocation6 + $0x24] sm:$0xf]
    %v154 = vld [vmem:[#allocation6 + $0x28] sm:$0xf]
    %v155 = vld [vmem:[#allocation6 + $0x2c] sm:$0xf]
    %v156 = vld [vmem:[#allocation6 + $0x30] sm:$0xf]
    %v157 = vld [vmem:[#allocation6 + $0x34] sm:$0xf]
    %v158 = vld [vmem:[#allocation6 + $0x38] sm:$0xf]
    %v159 = vld [vmem:[#allocation6 + $0x3c] sm:$0xf]
    %v192 = vunpack.c.l.b16 %v112
    %v193 = vunpack.c.l.b16 %v113
    %v194 = vunpack.c.l.b16 %v114
    %v195 = vunpack.c.l.b16 %v115
    %v196 = vunpack.c.l.b16 %v116
    %v197 = vunpack.c.l.b16 %v117
    %v198 = vunpack.c.l.b16 %v118
    %v199 = vunpack.c.l.b16 %v119
    %v200 = vunpack.c.l.b16 %v120
    %v201 = vunpack.c.l.b16 %v121
    %v202 = vunpack.c.l.b16 %v122
    %v203 = vunpack.c.l.b16 %v123
    %v204 = vunpack.c.l.b16 %v124
    %v205 = vunpack.c.l.b16 %v125
    %v206 = vunpack.c.l.b16 %v126
    %v207 = vunpack.c.l.b16 %v127
    %v208 = vunpack.c.l.b16 %v128
    %v209 = vunpack.c.l.b16 %v129
    %v210 = vunpack.c.l.b16 %v130
    %v211 = vunpack.c.l.b16 %v131
    %v212 = vunpack.c.l.b16 %v132
    %v213 = vunpack.c.l.b16 %v133
    %v214 = vunpack.c.l.b16 %v134
    %v215 = vunpack.c.l.b16 %v135
    %v216 = vunpack.c.l.b16 %v136
    %v217 = vunpack.c.l.b16 %v137
    %v218 = vunpack.c.l.b16 %v138
    %v219 = vunpack.c.l.b16 %v139
    %v220 = vunpack.c.l.b16 %v140
    %v221 = vunpack.c.l.b16 %v141
    %v222 = vunpack.c.l.b16 %v142
    %v223 = vunpack.c.l.b16 %v143
    %v224 = vpack.c.b16 %v193, %v192
    %v225 = vpack.c.b16 %v195, %v194
    %v226 = vpack.c.b16 %v197, %v196
    %v227 = vpack.c.b16 %v199, %v198
    %v228 = vpack.c.b16 %v201, %v200
    %v229 = vpack.c.b16 %v203, %v202
    %v230 = vpack.c.b16 %v205, %v204
    %v231 = vpack.c.b16 %v207, %v206
    %v232 = vpack.c.b16 %v209, %v208
    %v233 = vpack.c.b16 %v211, %v210
    %v234 = vpack.c.b16 %v213, %v212
    %v235 = vpack.c.b16 %v215, %v214
    %v236 = vpack.c.b16 %v217, %v216
    %v237 = vpack.c.b16 %v219, %v218
    %v238 = vpack.c.b16 %v221, %v220
    %v239 = vpack.c.b16 %v223, %v222
    %v272 = vunpack.c.l.b16 %v144
    %v273 = vunpack.c.l.b16 %v145
    %v274 = vunpack.c.l.b16 %v146
    %v275 = vunpack.c.l.b16 %v147
    %v276 = vunpack.c.l.b16 %v148
    %v277 = vunpack.c.l.b16 %v149
    %v278 = vunpack.c.l.b16 %v150
    %v279 = vunpack.c.l.b16 %v151
    %v280 = vunpack.c.l.b16 %v152
    %v281 = vunpack.c.l.b16 %v153
    %v282 = vunpack.c.l.b16 %v154
    %v283 = vunpack.c.l.b16 %v155
    %v284 = vunpack.c.l.b16 %v156
    %v285 = vunpack.c.l.b16 %v157
    %v286 = vunpack.c.l.b16 %v158
    %v287 = vunpack.c.l.b16 %v159
    %v288 = vpack.c.b16 %v273, %v272
    %v289 = vpack.c.b16 %v275, %v274
    %v290 = vpack.c.b16 %v277, %v276
    %v291 = vpack.c.b16 %v279, %v278
    %v292 = vpack.c.b16 %v281, %v280
    %v293 = vpack.c.b16 %v283, %v282
    %v294 = vpack.c.b16 %v285, %v284
    %v295 = vpack.c.b16 %v287, %v286
    %304 = vmatprep.subr.bf16.mxu0 0
    %305 = vmatpush1.bf16.msra.mxu0 %v288
    %306 = vmatprep.subr.bf16.mxu0 0
    %307 = vmatpush1.bf16.msra.mxu0 %v289
    %308 = vmatprep.subr.bf16.mxu0 0
    %309 = vmatpush1.bf16.msra.mxu0 %v290
    %310 = vmatprep.subr.bf16.mxu0 0
    %311 = vmatpush1.bf16.msra.mxu0 %v291
    %312 = vmatprep.subr.bf16.mxu0 0
    %313 = vmatpush1.bf16.msra.mxu0 %v292
    %314 = vmatprep.subr.bf16.mxu0 0
    %315 = vmatpush1.bf16.msra.mxu0 %v293
    %316 = vmatprep.subr.bf16.mxu0 0
    %317 = vmatpush1.bf16.msra.mxu0 %v294
    %318 = vmatprep.subr.bf16.mxu0 0
    %319 = vmatpush1.bf16.msra.mxu0 %v295
    %320 = vmatprep.subr.bf16.mxu0 0
    %321 = vmatpush1.bf16.msra.mxu0 0
    %322 = vmatprep.subr.bf16.mxu0 0
    %323 = vmatpush1.bf16.msra.mxu0 0
    %324 = vmatprep.subr.bf16.mxu0 0
    %325 = vmatpush1.bf16.msra.mxu0 0
    %326 = vmatprep.subr.bf16.mxu0 0
    %327 = vmatpush1.bf16.msra.mxu0 0
    %328 = vmatprep.subr.bf16.mxu0 0
    %329 = vmatpush1.bf16.msra.mxu0 0
    %330 = vmatprep.subr.bf16.mxu0 0
    %331 = vmatpush1.bf16.msra.mxu0 0
    %332 = vmatprep.subr.bf16.mxu0 0
    %333 = vmatpush1.bf16.msra.mxu0 0
    %334 = vmatprep.subr.bf16.mxu0 0
    %335 = vmatpush1.bf16.msra.mxu0 0
    %336 = vmatprep.mubr.bf16.mxu0 0
    %337 = vmatmul.mubr.bf16.gmra.mrb[0].mxu0 %v224
    %v338 = vpop.f32.mrb[0].mxu0
    %v339 = vadd.f32 0.0, %v338
    %v340 = vpop.f32.mrb[0].mxu0
    %v341 = vpop.f32.mrb[0].mxu0
    %v342 = vadd.f32 0.0, %v341
    %v343 = vpop.f32.mrb[0].mxu0
    %344 = vmatprep.mubr.bf16.mxu0 0
    %345 = vmatmul.mubr.bf16.gmra.mrb[0].mxu0 %v225
    %v346 = vpop.f32.mrb[0].mxu0
    %v347 = vadd.f32 0.0, %v346
    %v348 = vpop.f32.mrb[0].mxu0
    %v349 = vpop.f32.mrb[0].mxu0
    %v350 = vadd.f32 0.0, %v349
    %v351 = vpop.f32.mrb[0].mxu0
    %352 = vmatprep.mubr.bf16.mxu0 0
    %353 = vmatmul.mubr.bf16.gmra.mrb[0].mxu0 %v226
    %v354 = vpop.f32.mrb[0].mxu0
    %v355 = vadd.f32 0.0, %v354
    %v356 = vpop.f32.mrb[0].mxu0
    %v357 = vpop.f32.mrb[0].mxu0
    %v358 = vadd.f32 0.0, %v357
    %v359 = vpop.f32.mrb[0].mxu0
    %360 = vmatprep.mubr.bf16.mxu0 0
    %361 = vmatmul.mubr.bf16.gmra.mrb[0].mxu0 %v227
    %v362 = vpop.f32.mrb[0].mxu0
    %v363 = vadd.f32 0.0, %v362
    %v364 = vpop.f32.mrb[0].mxu0
    %v365 = vpop.f32.mrb[0].mxu0
    %v366 = vadd.f32 0.0, %v365
    %v367 = vpop.f32.mrb[0].mxu0
    %368 = vmatprep.mubr.bf16.mxu0 0
    %369 = vmatmul.mubr.bf16.gmra.mrb[0].mxu0 %v228
    %v370 = vpop.f32.mrb[0].mxu0
    %v371 = vadd.f32 0.0, %v370
    %v372 = vpop.f32.mrb[0].mxu0
    %v373 = vpop.f32.mrb[0].mxu0
    %v374 = vadd.f32 0.0, %v373
    %v375 = vpop.f32.mrb[0].mxu0
    %376 = vmatprep.mubr.bf16.mxu0 0
    %377 = vmatmul.mubr.bf16.gmra.mrb[0].mxu0 %v229
    %v378 = vpop.f32.mrb[0].mxu0
    %v379 = vadd.f32 0.0, %v378
    %v380 = vpop.f32.mrb[0].mxu0
    %v381 = vpop.f32.mrb[0].mxu0
    %v382 = vadd.f32 0.0, %v381
    %v383 = vpop.f32.mrb[0].mxu0
    %384 = vmatprep.mubr.bf16.mxu0 0
    %385 = vmatmul.mubr.bf16.gmra.mrb[0].mxu0 %v230
    %v386 = vpop.f32.mrb[0].mxu0
    %v387 = vadd.f32 0.0, %v386
    %v388 = vpop.f32.mrb[0].mxu0
    %v389 = vpop.f32.mrb[0].mxu0
    %v390 = vadd.f32 0.0, %v389
    %v391 = vpop.f32.mrb[0].mxu0
    %392 = vmatprep.mubr.bf16.mxu0 0
    %393 = vmatmul.mubr.bf16.gmra.mrb[0].mxu0 %v231
    %v394 = vpop.f32.mrb[0].mxu0
    %v395 = vadd.f32 0.0, %v394
    %v396 = vpop.f32.mrb[0].mxu0
    %v397 = vpop.f32.mrb[0].mxu0
    %v398 = vadd.f32 0.0, %v397
    %v399 = vpop.f32.mrb[0].mxu0
    %400 = vmatprep.mubr.bf16.mxu0 0
    %401 = vmatmul.mubr.bf16.gmra.mrb[0].mxu0 %v232
    %v402 = vpop.f32.mrb[0].mxu0
    %v403 = vadd.f32 0.0, %v402
    %v404 = vpop.f32.mrb[0].mxu0
    %v405 = vpop.f32.mrb[0].mxu0
    %v406 = vadd.f32 0.0, %v405
    %v407 = vpop.f32.mrb[0].mxu0
    %408 = vmatprep.mubr.bf16.mxu0 0
    %409 = vmatmul.mubr.bf16.gmra.mrb[0].mxu0 %v233
    %v410 = vpop.f32.mrb[0].mxu0
    %v411 = vadd.f32 0.0, %v410
    %v412 = vpop.f32.mrb[0].mxu0
    %v413 = vpop.f32.mrb[0].mxu0
    %v414 = vadd.f32 0.0, %v413
    %v415 = vpop.f32.mrb[0].mxu0
    %416 = vmatprep.mubr.bf16.mxu0 0
    %417 = vmatmul.mubr.bf16.gmra.mrb[0].mxu0 %v234
    %v418 = vpop.f32.mrb[0].mxu0
    %v419 = vadd.f32 0.0, %v418
    %v420 = vpop.f32.mrb[0].mxu0
    %v421 = vpop.f32.mrb[0].mxu0
    %v422 = vadd.f32 0.0, %v421
    %v423 = vpop.f32.mrb[0].mxu0
    %424 = vmatprep.mubr.bf16.mxu0 0
    %425 = vmatmul.mubr.bf16.gmra.mrb[0].mxu0 %v235
    %v426 = vpop.f32.mrb[0].mxu0
    %v427 = vadd.f32 0.0, %v426
    %v428 = vpop.f32.mrb[0].mxu0
    %v429 = vpop.f32.mrb[0].mxu0
    %v430 = vadd.f32 0.0, %v429
    %v431 = vpop.f32.mrb[0].mxu0
    %432 = vmatprep.mubr.bf16.mxu0 0
    %433 = vmatmul.mubr.bf16.gmra.mrb[0].mxu0 %v236
    %v434 = vpop.f32.mrb[0].mxu0
    %v435 = vadd.f32 0.0, %v434
    %v436 = vpop.f32.mrb[0].mxu0
    %v437 = vpop.f32.mrb[0].mxu0
    %v438 = vadd.f32 0.0, %v437
    %v439 = vpop.f32.mrb[0].mxu0
    %440 = vmatprep.mubr.bf16.mxu0 0
    %441 = vmatmul.mubr.bf16.gmra.mrb[0].mxu0 %v237
    %v442 = vpop.f32.mrb[0].mxu0
    %v443 = vadd.f32 0.0, %v442
    %v444 = vpop.f32.mrb[0].mxu0
    %v445 = vpop.f32.mrb[0].mxu0
    %v446 = vadd.f32 0.0, %v445
    %v447 = vpop.f32.mrb[0].mxu0
    %448 = vmatprep.mubr.bf16.mxu0 0
    %449 = vmatmul.mubr.bf16.gmra.mrb[0].mxu0 %v238
    %v450 = vpop.f32.mrb[0].mxu0
    %v451 = vadd.f32 0.0, %v450
    %v452 = vpop.f32.mrb[0].mxu0
    %v453 = vpop.f32.mrb[0].mxu0
    %v454 = vadd.f32 0.0, %v453
    %v455 = vpop.f32.mrb[0].mxu0
    %456 = vmatprep.mubr.bf16.mxu0 0
    %457 = vmatmul.mubr.bf16.gmra.mrb[0].mxu0 %v239
    %v458 = vpop.f32.mrb[0].mxu0
    %v459 = vadd.f32 0.0, %v458
    %v460 = vpop.f32.mrb[0].mxu0
    %v461 = vpop.f32.mrb[0].mxu0
    %v462 = vadd.f32 0.0, %v461
    %v463 = vpop.f32.mrb[0].mxu0
    %464 = vdwg.mxu0
    %v465 = vadd.f32 %v80, %v339
    %v466 = vadd.f32 %v81, %v342
    %v467 = vadd.f32 %v82, %v347
    %v468 = vadd.f32 %v83, %v350
    %v469 = vadd.f32 %v84, %v355
    %v470 = vadd.f32 %v85, %v358
    %v471 = vadd.f32 %v86, %v363
    %v472 = vadd.f32 %v87, %v366
    %v473 = vadd.f32 %v88, %v371
    %v474 = vadd.f32 %v89, %v374
    %v475 = vadd.f32 %v90, %v379
    %v476 = vadd.f32 %v91, %v382
    %v477 = vadd.f32 %v92, %v387
    %v478 = vadd.f32 %v93, %v390
    %v479 = vadd.f32 %v94, %v395
    %v480 = vadd.f32 %v95, %v398
    %v481 = vadd.f32 %v96, %v403
    %v482 = vadd.f32 %v97, %v406
    %v483 = vadd.f32 %v98, %v411
    %v484 = vadd.f32 %v99, %v414
    %v485 = vadd.f32 %v100, %v419
    %v486 = vadd.f32 %v101, %v422
    %v487 = vadd.f32 %v102, %v427
    %v488 = vadd.f32 %v103, %v430
    %v489 = vadd.f32 %v104, %v435
    %v490 = vadd.f32 %v105, %v438
    %v491 = vadd.f32 %v106, %v443
    %v492 = vadd.f32 %v107, %v446
    %v493 = vadd.f32 %v108, %v451
    %v494 = vadd.f32 %v109, %v454
    %v495 = vadd.f32 %v110, %v459
    %v496 = vadd.f32 %v111, %v462
    %497 = vst [vmem:[#allocation2] sm:$0xff] %v465
    %498 = vst [vmem:[#allocation2 + $0x8] sm:$0xff] %v466
    %499 = vst [vmem:[#allocation2 + $0x10] sm:$0xff] %v467
    %500 = vst [vmem:[#allocation2 + $0x18] sm:$0xff] %v468
    %501 = vst [vmem:[#allocation2 + $0x20] sm:$0xff] %v469
    %502 = vst [vmem:[#allocation2 + $0x28] sm:$0xff] %v470
    %503 = vst [vmem:[#allocation2 + $0x30] sm:$0xff] %v471
    %504 = vst [vmem:[#allocation2 + $0x38] sm:$0xff] %v472
    %505 = vst [vmem:[#allocation2 + $0x40] sm:$0xff] %v473
    %506 = vst [vmem:[#allocation2 + $0x48] sm:$0xff] %v474
    %507 = vst [vmem:[#allocation2 + $0x50] sm:$0xff] %v475
    %508 = vst [vmem:[#allocation2 + $0x58] sm:$0xff] %v476
    %509 = vst [vmem:[#allocation2 + $0x60] sm:$0xff] %v477
    %510 = vst [vmem:[#allocation2 + $0x68] sm:$0xff] %v478
    %511 = vst [vmem:[#allocation2 + $0x70] sm:$0xff] %v479
    %512 = vst [vmem:[#allocation2 + $0x78] sm:$0xff] %v480
    %513 = vst [vmem:[#allocation2 + $0x80] sm:$0xff] %v481
    %514 = vst [vmem:[#allocation2 + $0x88] sm:$0xff] %v482
    %515 = vst [vmem:[#allocation2 + $0x90] sm:$0xff] %v483
    %516 = vst [vmem:[#allocation2 + $0x98] sm:$0xff] %v484
    %517 = vst [vmem:[#allocation2 + $0xa0] sm:$0xff] %v485
    %518 = vst [vmem:[#allocation2 + $0xa8] sm:$0xff] %v486
    %519 = vst [vmem:[#allocation2 + $0xb0] sm:$0xff] %v487
    %520 = vst [vmem:[#allocation2 + $0xb8] sm:$0xff] %v488
    %521 = vst [vmem:[#allocation2 + $0xc0] sm:$0xff] %v489
    %522 = vst [vmem:[#allocation2 + $0xc8] sm:$0xff] %v490
    %523 = vst [vmem:[#allocation2 + $0xd0] sm:$0xff] %v491
    %524 = vst [vmem:[#allocation2 + $0xd8] sm:$0xff] %v492
    %525 = vst [vmem:[#allocation2 + $0xe0] sm:$0xff] %v493
    %526 = vst [vmem:[#allocation2 + $0xe8] sm:$0xff] %v494
    %527 = vst [vmem:[#allocation2 + $0xf0] sm:$0xff] %v495
    %528 = vst [vmem:[#allocation2 + $0xf8] sm:$0xff] %v496
    // Predicated region
    $region26: #{tpu_custom_call.1} parent=1 // pred_check
      %p529 = pneg %p44
    $region27: #{tpu_custom_call.1} parent=1 // pred_check_branch
      %531 = sbr.rel (%p529) target = $region29
    $region28: #{tpu_custom_call.1} parent=1 // pred_region
      %v532 = vld [vmem:[#allocation2] sm:$0xff]
      %v533 = vld [vmem:[#allocation2 + $0x8] sm:$0xff]
      %v534 = vld [vmem:[#allocation2 + $0x10] sm:$0xff]
      %v535 = vld [vmem:[#allocation2 + $0x18] sm:$0xff]
      %v536 = vld [vmem:[#allocation2 + $0x20] sm:$0xff]
      %v537 = vld [vmem:[#allocation2 + $0x28] sm:$0xff]
      %v538 = vld [vmem:[#allocation2 + $0x30] sm:$0xff]
      %v539 = vld [vmem:[#allocation2 + $0x38] sm:$0xff]
      %v540 = vld [vmem:[#allocation2 + $0x40] sm:$0xff]
      %v541 = vld [vmem:[#allocation2 + $0x48] sm:$0xff]
      %v542 = vld [vmem:[#allocation2 + $0x50] sm:$0xff]
      %v543 = vld [vmem:[#allocation2 + $0x58] sm:$0xff]
      %v544 = vld [vmem:[#allocation2 + $0x60] sm:$0xff]
      %v545 = vld [vmem:[#allocation2 + $0x68] sm:$0xff]
      %v546 = vld [vmem:[#allocation2 + $0x70] sm:$0xff]
      %v547 = vld [vmem:[#allocation2 + $0x78] sm:$0xff]
      %v548 = vld [vmem:[#allocation2 + $0x80] sm:$0xff]
      %v549 = vld [vmem:[#allocation2 + $0x88] sm:$0xff]
      %v550 = vld [vmem:[#allocation2 + $0x90] sm:$0xff]
      %v551 = vld [vmem:[#allocation2 + $0x98] sm:$0xff]
      %v552 = vld [vmem:[#allocation2 + $0xa0] sm:$0xff]
      %v553 = vld [vmem:[#allocation2 + $0xa8] sm:$0xff]
      %v554 = vld [vmem:[#allocation2 + $0xb0] sm:$0xff]
      %v555 = vld [vmem:[#allocation2 + $0xb8] sm:$0xff]
      %v556 = vld [vmem:[#allocation2 + $0xc0] sm:$0xff]
      %v557 = vld [vmem:[#allocation2 + $0xc8] sm:$0xff]
      %v558 = vld [vmem:[#allocation2 + $0xd0] sm:$0xff]
      %v559 = vld [vmem:[#allocation2 + $0xd8] sm:$0xff]
      %v560 = vld [vmem:[#allocation2 + $0xe0] sm:$0xff]
      %v561 = vld [vmem:[#allocation2 + $0xe8] sm:$0xff]
      %v562 = vld [vmem:[#allocation2 + $0xf0] sm:$0xff]
      %v563 = vld [vmem:[#allocation2 + $0xf8] sm:$0xff]
      %v564 = vld [vmem:[%s2] sm:$0x1]
      %v566 = vlaneseq
      %v567 = vshrl.u32 %v566, 7
      %v568 = vsub.s32 0, %v567
      %v569 = vrot.slane %v564, %v568
      %v571 = vadd.f32 %v532, %v569
      %v572 = vadd.f32 %v533, %v569
      %v573 = vadd.f32 %v534, %v569
      %v574 = vadd.f32 %v535, %v569
      %v575 = vadd.f32 %v536, %v569
      %v576 = vadd.f32 %v537, %v569
      %v577 = vadd.f32 %v538, %v569
      %v578 = vadd.f32 %v539, %v569
      %v579 = vadd.f32 %v540, %v569
      %v580 = vadd.f32 %v541, %v569
      %v581 = vadd.f32 %v542, %v569
      %v582 = vadd.f32 %v543, %v569
      %v583 = vadd.f32 %v544, %v569
      %v584 = vadd.f32 %v545, %v569
      %v585 = vadd.f32 %v546, %v569
      %v586 = vadd.f32 %v547, %v569
      %v587 = vadd.f32 %v548, %v569
      %v588 = vadd.f32 %v549, %v569
      %v589 = vadd.f32 %v550, %v569
      %v590 = vadd.f32 %v551, %v569
      %v591 = vadd.f32 %v552, %v569
      %v592 = vadd.f32 %v553, %v569
      %v593 = vadd.f32 %v554, %v569
      %v594 = vadd.f32 %v555, %v569
      %v595 = vadd.f32 %v556, %v569
      %v596 = vadd.f32 %v557, %v569
      %v597 = vadd.f32 %v558, %v569
      %v598 = vadd.f32 %v559, %v569
      %v599 = vadd.f32 %v560, %v569
      %v600 = vadd.f32 %v561, %v569
      %v601 = vadd.f32 %v562, %v569
      %v602 = vadd.f32 %v563, %v569
      %v603 = vmax.f32 %v571, 0.0
      %v604 = vmax.f32 %v572, 0.0
      %v605 = vmax.f32 %v573, 0.0
      %v606 = vmax.f32 %v574, 0.0
      %v607 = vmax.f32 %v575, 0.0
      %v608 = vmax.f32 %v576, 0.0
      %v609 = vmax.f32 %v577, 0.0
      %v610 = vmax.f32 %v578, 0.0
      %v611 = vmax.f32 %v579, 0.0
      %v612 = vmax.f32 %v580, 0.0
      %v613 = vmax.f32 %v581, 0.0
      %v614 = vmax.f32 %v582, 0.0
      %v615 = vmax.f32 %v583, 0.0
      %v616 = vmax.f32 %v584, 0.0
      %v617 = vmax.f32 %v585, 0.0
      %v618 = vmax.f32 %v586, 0.0
      %v619 = vmax.f32 %v587, 0.0
      %v620 = vmax.f32 %v588, 0.0
      %v621 = vmax.f32 %v589, 0.0
      %v622 = vmax.f32 %v590, 0.0
      %v623 = vmax.f32 %v591, 0.0
      %v624 = vmax.f32 %v592, 0.0
      %v625 = vmax.f32 %v593, 0.0
      %v626 = vmax.f32 %v594, 0.0
      %v627 = vmax.f32 %v595, 0.0
      %v628 = vmax.f32 %v596, 0.0
      %v629 = vmax.f32 %v597, 0.0
      %v630 = vmax.f32 %v598, 0.0
      %v631 = vmax.f32 %v599, 0.0
      %v632 = vmax.f32 %v600, 0.0
      %v633 = vmax.f32 %v601, 0.0
      %v634 = vmax.f32 %v602, 0.0
      %v635 = vpack.c.bf16 %v604, %v603
      %v636 = vpack.c.bf16 %v606, %v605
      %v637 = vpack.c.bf16 %v608, %v607
      %v638 = vpack.c.bf16 %v610, %v609
      %v639 = vpack.c.bf16 %v612, %v611
      %v640 = vpack.c.bf16 %v614, %v613
      %v641 = vpack.c.bf16 %v616, %v615
      %v642 = vpack.c.bf16 %v618, %v617
      %v643 = vpack.c.bf16 %v620, %v619
      %v644 = vpack.c.bf16 %v622, %v621
      %v645 = vpack.c.bf16 %v624, %v623
      %v646 = vpack.c.bf16 %v626, %v625
      %v647 = vpack.c.bf16 %v628, %v627
      %v648 = vpack.c.bf16 %v630, %v629
      %v649 = vpack.c.bf16 %v632, %v631
      %v650 = vpack.c.bf16 %v634, %v633
      %v667 = vunpack.c.l.b16 %v635
      %v668 = vunpack.c.h.b16 %v635
      %v669 = vunpack.c.l.b16 %v636
      %v670 = vunpack.c.h.b16 %v636
      %v671 = vunpack.c.l.b16 %v637
      %v672 = vunpack.c.h.b16 %v637
      %v673 = vunpack.c.l.b16 %v638
      %v674 = vunpack.c.h.b16 %v638
      %v675 = vunpack.c.l.b16 %v639
      %v676 = vunpack.c.h.b16 %v639
      %v677 = vunpack.c.l.b16 %v640
      %v678 = vunpack.c.h.b16 %v640
      %v679 = vunpack.c.l.b16 %v641
      %v680 = vunpack.c.h.b16 %v641
      %v681 = vunpack.c.l.b16 %v642
      %v682 = vunpack.c.h.b16 %v642
      %v683 = vunpack.c.l.b16 %v643
      %v684 = vunpack.c.h.b16 %v643
      %v685 = vunpack.c.l.b16 %v644
      %v686 = vunpack.c.h.b16 %v644
      %v687 = vunpack.c.l.b16 %v645
      %v688 = vunpack.c.h.b16 %v645
      %v689 = vunpack.c.l.b16 %v646
      %v690 = vunpack.c.h.b16 %v646
      %v691 = vunpack.c.l.b16 %v647
      %v692 = vunpack.c.h.b16 %v647
      %v693 = vunpack.c.l.b16 %v648
      %v694 = vunpack.c.h.b16 %v648
      %v695 = vunpack.c.l.b16 %v649
      %v696 = vunpack.c.h.b16 %v649
      %v697 = vunpack.c.l.b16 %v650
      %v698 = vunpack.c.h.b16 %v650
      %v699 = vpack.c.b16 %v667, %v667
      %v700 = vpack.c.b16 %v668, %v668
      %v701 = vpack.c.b16 %v669, %v669
      %v702 = vpack.c.b16 %v670, %v670
      %v703 = vpack.c.b16 %v671, %v671
      %v704 = vpack.c.b16 %v672, %v672
      %v705 = vpack.c.b16 %v673, %v673
      %v706 = vpack.c.b16 %v674, %v674
      %v707 = vpack.c.b16 %v675, %v675
      %v708 = vpack.c.b16 %v676, %v676
      %v709 = vpack.c.b16 %v677, %v677
      %v710 = vpack.c.b16 %v678, %v678
      %v711 = vpack.c.b16 %v679, %v679
      %v712 = vpack.c.b16 %v680, %v680
      %v713 = vpack.c.b16 %v681, %v681
      %v714 = vpack.c.b16 %v682, %v682
      %v715 = vpack.c.b16 %v683, %v683
      %v716 = vpack.c.b16 %v684, %v684
      %v717 = vpack.c.b16 %v685, %v685
      %v718 = vpack.c.b16 %v686, %v686
      %v719 = vpack.c.b16 %v687, %v687
      %v720 = vpack.c.b16 %v688, %v688
      %v721 = vpack.c.b16 %v689, %v689
      %v722 = vpack.c.b16 %v690, %v690
      %v723 = vpack.c.b16 %v691, %v691
      %v724 = vpack.c.b16 %v692, %v692
      %v725 = vpack.c.b16 %v693, %v693
      %v726 = vpack.c.b16 %v694, %v694
      %v727 = vpack.c.b16 %v695, %v695
      %v728 = vpack.c.b16 %v696, %v696
      %v729 = vpack.c.b16 %v697, %v697
      %v730 = vpack.c.b16 %v698, %v698
      %763 = vst [vmem:[#allocation8] sm:$0xf] %v699
      %764 = vst [vmem:[#allocation8 + $0x4] sm:$0xf] %v700
      %765 = vst [vmem:[#allocation8 + $0x8] sm:$0xf] %v701
      %766 = vst [vmem:[#allocation8 + $0xc] sm:$0xf] %v702
      %767 = vst [vmem:[#allocation8 + $0x10] sm:$0xf] %v703
      %768 = vst [vmem:[#allocation8 + $0x14] sm:$0xf] %v704
      %769 = vst [vmem:[#allocation8 + $0x18] sm:$0xf] %v705
      %770 = vst [vmem:[#allocation8 + $0x1c] sm:$0xf] %v706
      %771 = vst [vmem:[#allocation8 + $0x20] sm:$0xf] %v707
      %772 = vst [vmem:[#allocation8 + $0x24] sm:$0xf] %v708
      %773 = vst [vmem:[#allocation8 + $0x28] sm:$0xf] %v709
      %774 = vst [vmem:[#allocation8 + $0x2c] sm:$0xf] %v710
      %775 = vst [vmem:[#allocation8 + $0x30] sm:$0xf] %v711
      %776 = vst [vmem:[#allocation8 + $0x34] sm:$0xf] %v712
      %777 = vst [vmem:[#allocation8 + $0x38] sm:$0xf] %v713
      %778 = vst [vmem:[#allocation8 + $0x3c] sm:$0xf] %v714
      %779 = vst [vmem:[#allocation8 + $0x40] sm:$0xf] %v715
      %780 = vst [vmem:[#allocation8 + $0x44] sm:$0xf] %v716
      %781 = vst [vmem:[#allocation8 + $0x48] sm:$0xf] %v717
      %782 = vst [vmem:[#allocation8 + $0x4c] sm:$0xf] %v718
      %783 = vst [vmem:[#allocation8 + $0x50] sm:$0xf] %v719
      %784 = vst [vmem:[#allocation8 + $0x54] sm:$0xf] %v720
      %785 = vst [vmem:[#allocation8 + $0x58] sm:$0xf] %v721
      %786 = vst [vmem:[#allocation8 + $0x5c] sm:$0xf] %v722
      %787 = vst [vmem:[#allocation8 + $0x60] sm:$0xf] %v723
      %788 = vst [vmem:[#allocation8 + $0x64] sm:$0xf] %v724
      %789 = vst [vmem:[#allocation8 + $0x68] sm:$0xf] %v725
      %790 = vst [vmem:[#allocation8 + $0x6c] sm:$0xf] %v726
      %791 = vst [vmem:[#allocation8 + $0x70] sm:$0xf] %v727
      %792 = vst [vmem:[#allocation8 + $0x74] sm:$0xf] %v728
      %793 = vst [vmem:[#allocation8 + $0x78] sm:$0xf] %v729
      %794 = vst [vmem:[#allocation8 + $0x7c] sm:$0xf] %v730
    $region29: #{tpu_custom_call.1} parent=1 // pred_fallthru
      _
    // Predicated region
    $region30: #{tpu_custom_call.1} parent=1 // pred_check
      _
    $region31: #{tpu_custom_call.1} parent=1 // pred_check_branch
      %796 = sbr.rel (0) target = $region33
    $region32: #{tpu_custom_call.1} parent=1 // pred_region
      %s798 = ssub.s32 2048, 2048
      %799 = vsyncadd [#allocation5], %s798
      %s800 = sshll.u32 [#allocation8], 4
      %s801 = int_to_ptr.vmem [resolvable:$true] %s800
      %806 = dma.vmem_to_hbm [thread:$0]  %s801, 2048, %s3, [#allocation5], 64, 64, 4
    $region33: #{tpu_custom_call.1} parent=1 // pred_fallthru
      _
    // Predicated region
    $region34: #{tpu_custom_call.1} parent=1 // pred_check
      _
    $region35: #{tpu_custom_call.1} parent=1 // pred_check_branch
      %808 = sbr.rel (0) target = $region37
    $region36: #{tpu_custom_call.1} parent=1 // pred_region
      %809 = dma.done [#allocation5], 2048
    $region37: #{tpu_custom_call.1} parent=1 // pred_fallthru
      _
    %810 = vsyncpa [#allocation4], 1
    %811 = vsyncpa [#allocation7], 1
    %812 = vsyncpa [#allocation5], 1

</llo_original>
